<compile_context>
chip_gen: v7x
topology: tpu7x:2x2x1
jax: 0.10.0
libtpu: 0.0.40
codegen_flags: <defaults>
</compile_context>

<pallas_src>
import functools

import jax
import jax.numpy as jnp
from jax import lax
from jax.experimental import pallas as pl
from jax.experimental.pallas import tpu as pltpu

_LANE = 128
_SUBLANE = 8


def _cdiv(a, b):
    return (a + b - 1) // b


def _round_up(x, m):
    return _cdiv(x, m) * m


def _vmem_caps():
    """Physical VMEM capacity and a chip-appropriate scoped limit."""
    try:
        cap = int(pltpu.get_tpu_info().vmem_capacity_bytes)
    except Exception:  # conservative (v7x-sized) fallback
        cap = 64 * 1024 * 1024
    # v5e/v6e (128 MiB physical) -> 96 MiB scoped; v7x (64 MiB) -> 48 MiB.
    limit = min(cap * 3 // 4, 112 * 1024 * 1024)
    return cap, limit


# --------------------------------------------------------------------------
# Support pass: gridded reduction over support-row tiles.
#   centering (+ optional L2 norm), in-kernel one-hot, prototype-sum / count
#   accumulators in VMEM scratch, finalize -> prototypes + ||proto||^2 row.
# Padded support rows carry label -1 (never match a class); padded feature
# columns are zero so norms / means / distances are unaffected.
# --------------------------------------------------------------------------
def _support_kernel(*refs, normalize, emit_features):
    if emit_features:
        (center_ref, labels_ref, x_ref,
         feat_ref, proto_ref, psq_ref, sum_acc, cnt_acc) = refs
    else:
        (center_ref, labels_ref, x_ref,
         proto_ref, psq_ref, sum_acc, cnt_acc) = refs
        feat_ref = None

    step = pl.program_id(0)

    @pl.when(step == 0)
    def _():
        sum_acc[...] = jnp.zeros_like(sum_acc)
        cnt_acc[...] = jnp.zeros_like(cnt_acc)

    c = center_ref[...]                                     # (1, D_pad)
    x = x_ref[...].astype(jnp.float32) - c                  # (TS, D_pad)
    if normalize:
        sumsq = jnp.sum(x * x, axis=-1, keepdims=True)
        # v / max(||v||, 1e-12) == v * rsqrt(max(||v||^2, 1e-24)); rsqrt -> EUP
        x = x * lax.rsqrt(jnp.maximum(sumsq, 1e-24))
    if feat_ref is not None:
        feat_ref[...] = x.astype(feat_ref.dtype)

    labels = labels_ref[...]                                # (1, TS) int32
    c_pad = proto_ref.shape[0]
    cls_ids = lax.broadcasted_iota(jnp.int32, (c_pad, labels.shape[1]), 0)
    onehot = (cls_ids == labels).astype(jnp.float32)        # (C_pad, TS)
    sum_acc[...] += jnp.dot(onehot, x, preferred_element_type=jnp.float32)
    cnt_acc[...] += jnp.sum(onehot, axis=-1, keepdims=True)

    @pl.when(step == pl.num_programs(0) - 1)
    def _():
        # TODO(synk): empty classes yield an all-zero prototype here; PyTorch's
        # per-class mean of an empty class would be NaN.
        protos = sum_acc[...] / jnp.maximum(cnt_acc[...], 1.0)   # (C_pad, D_pad)
        proto_ref[...] = protos.astype(proto_ref.dtype)
        # ||proto||^2 emitted directly as a lane-dense (1, C_pad) row.
        psq_ref[...] = lax.dot_general(
            jnp.ones((1, protos.shape[1]), jnp.float32), protos * protos,
            (((1,), (1,)), ((), ())), preferred_element_type=jnp.float32)


# --------------------------------------------------------------------------
# Query pass (gridded over query-row tiles):
#   centering + (optional) L2 norm + -euclidean distance + optional softmax.
# --------------------------------------------------------------------------
def _query_kernel(center_ref, proto_ref, psq_ref, q_ref, out_ref, *,
                  normalize, use_softmax, temperature, n_classes):
    c = center_ref[...]                                     # (1, D_pad)     resident
    p = proto_ref[...]                                      # (C_pad, D_pad) resident
    psq = psq_ref[...]                                      # (1, C_pad)     resident
    x = q_ref[...].astype(jnp.float32) - c                  # (TQ, D_pad)
    if normalize:
        sumsq = jnp.sum(x * x, axis=-1, keepdims=True)
        x = x * lax.rsqrt(jnp.maximum(sumsq, 1e-24))
        # After L2 normalization ||x||^2 == 1 (except the degenerate ~zero
        # vector) -> skip a second cross-lane reduction over D.
        q_sq = jnp.where(sumsq > 1e-24, 1.0, sumsq * 1e24)
    else:
        q_sq = jnp.sum(x * x, axis=-1, keepdims=True)
    # Contract the LAST dims of both operands (A.B^T form, MXU-native).
    qp = lax.dot_general(x.astype(p.dtype), p, (((1,), (1,)), ((), ())),
                         preferred_element_type=jnp.float32)  # (TQ, C_pad)
    d2 = jnp.maximum(q_sq + psq - 2.0 * qp, 0.0)
    logits = -jnp.sqrt(d2)
    if use_softmax:
        col = lax.broadcasted_iota(jnp.int32, logits.shape, 1)
        z = jnp.where(col < n_classes, temperature * logits, -jnp.inf)
        z = z - jnp.max(z, axis=-1, keepdims=True)
        e = jnp.exp(z)
        # exact normalization so probabilities sum to 1
        logits = e / jnp.sum(e, axis=-1, keepdims=True)
    out_ref[...] = logits.astype(out_ref.dtype)


# --------------------------------------------------------------------------
# VMEM planning (chip-derived budgets, double-buffer accounting)
# --------------------------------------------------------------------------
def _plan_support(n_support, d_pad, c_pad, emit_features):
    cap, limit = _vmem_caps()
    margin = 2 << 20
    resident = (2 * 4 * c_pad * d_pad      # prototype output (2 buffers)
                + 2 * 4 * c_pad            # ||proto||^2 output
                + 2 * 4 * d_pad            # center input
                + 4 * c_pad * d_pad        # prototype-sum accumulator scratch
                + 4 * c_pad)               # count accumulator scratch
    per_row = (2 * 4 * d_pad               # support tile (double-buffered)
               + 4 * d_pad                 # centered/normalized temp
               + 4 * c_pad                 # one-hot column
               + 8)                        # labels
    if emit_features:
        per_row += 2 * 4 * d_pad           # feature output tile
    if resident + per_row * _LANE + margin > limit:
        limit = min(cap * 9 // 10, resident + per_row * _LANE + (8 << 20))
    if resident + per_row * _LANE + margin > limit:
        # TODO(synk): tile the class dimension when prototypes cannot stay
        # resident in VMEM; not needed for realistic few-shot episode sizes.
        raise ValueError("support-set prototype block does not fit in VMEM")
    cap_rows = (limit - margin - resident) // per_row
    cap_rows = max(_LANE, (cap_rows // _LANE) * _LANE)     # labels tile needs 128-lane blocks
    cap_rows = min(cap_rows, 1024)
    s128 = _round_up(max(n_support, 1), _LANE)
    n_tiles = _cdiv(s128, cap_rows)
    tile_s = _round_up(_cdiv(s128, n_tiles), _LANE)
    s_pad = _cdiv(s128, tile_s) * tile_s
    return tile_s, s_pad, int(limit)


def _plan_query(nq, d_pad, c_pad, proto_itemsize, q_itemsize):
    cap, limit = _vmem_caps()
    margin = 2 << 20
    # "Resident" inputs (constant index_map) still get 2 pipeline buffers each.
    resident = 2 * (proto_itemsize * c_pad * d_pad + 4 * d_pad + 4 * c_pad)
    per_row = (2 * q_itemsize * d_pad      # query tile (double-buffered)
               + 4 * d_pad                 # centered/normalized f32 temp
               + 2 * 4 * c_pad             # output tile (double-buffered)
               + 2 * 4 * c_pad)            # logits / exp temporaries
    if resident + per_row * _SUBLANE + margin > limit:
        limit = min(cap * 9 // 10, resident + per_row * 64 + (8 << 20))
    if resident + per_row * _SUBLANE + margin > limit:
        # TODO(synk): add a 2-D (query, class) grid so prototypes need not be
        # fully resident; not needed for realistic few-shot episode sizes.
        raise ValueError("prototype block does not fit in VMEM")
    cap_rows = (limit - margin - resident) // per_row
    cap_rows = max(_SUBLANE, (cap_rows // _SUBLANE) * _SUBLANE)
    cap_rows = min(cap_rows, 512)
    nq8 = _round_up(max(nq, 1), _SUBLANE)
    n_tiles = _cdiv(nq8, cap_rows)
    if n_tiles < 2 and nq8 >= 2 * _SUBLANE:
        n_tiles = 2            # v7x has 2 TensorCores; give each >= 1 row tile
    tile_q = _round_up(_cdiv(nq8, n_tiles), _SUBLANE)
    nq_pad = _cdiv(nq8, tile_q) * tile_q
    return tile_q, nq_pad, int(limit)


# --------------------------------------------------------------------------
# pallas_call wrappers
# --------------------------------------------------------------------------
def _support_call(x_pad, labels_row, center_row, c_pad, *, tile_s, normalize,
                  emit_features, proto_dtype, vmem_limit):
    s_pad, d_pad = x_pad.shape
    out_shapes, out_specs = [], []
    if emit_features:
        out_shapes.append(jax.ShapeDtypeStruct((s_pad, d_pad), jnp.float32))
        out_specs.append(pl.BlockSpec((tile_s, d_pad), lambda i: (i, 0)))
    out_shapes.append(jax.ShapeDtypeStruct((c_pad, d_pad), proto_dtype))
    out_specs.append(pl.BlockSpec((c_pad, d_pad), lambda i: (0, 0)))
    out_shapes.append(jax.ShapeDtypeStruct((1, c_pad), jnp.float32))
    out_specs.append(pl.BlockSpec((1, c_pad), lambda i: (0, 0)))

    return pl.pallas_call(
        functools.partial(_support_kernel, normalize=normalize,
                          emit_features=emit_features),
        out_shape=tuple(out_shapes),
        grid_spec=pltpu.PrefetchScalarGridSpec(
            num_scalar_prefetch=0,
            grid=(s_pad // tile_s,),
            in_specs=[
                pl.BlockSpec((1, d_pad), lambda i: (0, 0)),        # center (resident)
                pl.BlockSpec((1, tile_s), lambda i: (0, i)),       # labels tile
                pl.BlockSpec((tile_s, d_pad), lambda i: (i, 0)),   # support row tile
            ],
            out_specs=tuple(out_specs),
            scratch_shapes=[pltpu.VMEM((c_pad, d_pad), jnp.float32),
                            pltpu.VMEM((c_pad, 1), jnp.float32)]),
        compiler_params=pltpu.CompilerParams(
            dimension_semantics=("arbitrary",),        # reduction over support rows
            vmem_limit_bytes=vmem_limit),
    )(center_row, labels_row, x_pad)


def _query_call(q_pad, center_row, protos_pad, psq_row, *, tile_q, vmem_limit,
                normalize, use_softmax, temperature, n_classes):
    nq_pad, d_pad = q_pad.shape
    c_pad = protos_pad.shape[0]
    return pl.pallas_call(
        functools.partial(_query_kernel, normalize=normalize,
                          use_softmax=use_softmax,
                          temperature=float(temperature),
                          n_classes=n_classes),
        out_shape=jax.ShapeDtypeStruct((nq_pad, c_pad), jnp.float32),
        grid_spec=pltpu.PrefetchScalarGridSpec(
            num_scalar_prefetch=0,
            grid=(nq_pad // tile_q,),
            in_specs=[
                pl.BlockSpec((1, d_pad), lambda i: (0, 0)),        # center (resident)
                pl.BlockSpec((c_pad, d_pad), lambda i: (0, 0)),    # prototypes (resident)
                pl.BlockSpec((1, c_pad), lambda i: (0, 0)),        # ||proto||^2 (resident)
                pl.BlockSpec((tile_q, d_pad), lambda i: (i, 0)),   # query row tile
            ],
            out_specs=pl.BlockSpec((tile_q, c_pad), lambda i: (i, 0)),
        ),
        compiler_params=pltpu.CompilerParams(
            dimension_semantics=("parallel",),
            vmem_limit_bytes=vmem_limit),
    )(center_row, protos_pad, psq_row, q_pad)


# --------------------------------------------------------------------------
# Python-level "module" mirroring FewShotClassifier (backbone = Identity)
# --------------------------------------------------------------------------
class FewShotClassifierPallas:
    def __init__(self, use_softmax=False, feature_centering=None,
                 feature_normalization=None, proto_dtype=jnp.float32):
        if feature_normalization is not None and float(feature_normalization) != 2.0:
            # TODO(synk): general p-norm normalization (p != 2) not implemented.
            raise NotImplementedError("only p=2 feature normalization supported")
        self.use_softmax = use_softmax
        self.feature_centering = feature_centering           # (1, D), (D,), scalar, or None
        self.feature_normalization = feature_normalization
        self.proto_dtype = proto_dtype                        # bf16 halves resident VMEM
        self.prototypes = None
        self.support_features = None
        self.support_labels = None
        self._protos_pad = None
        self._psq_row = None
        self._center_row = None
        self._n_classes = None
        self._d = None

    def _padded_center(self, d, d_pad):
        if self.feature_centering is None:
            return jnp.zeros((1, d_pad), jnp.float32)
        c = jnp.asarray(self.feature_centering, jnp.float32).reshape(1, -1)
        if c.shape[1] == 1:   # scalar centering (PyTorch default torch.tensor(0))
            c = jnp.broadcast_to(c, (1, d))
        return jnp.pad(c, ((0, 0), (0, d_pad - d)))

    def process_support_set(self, support_images, support_labels,
                            n_classes=None, store_support_features=False):
        s, d = support_images.shape
        if n_classes is None:
            # NOTE: forces a device->host sync; pass n_classes for best perf.
            n_classes = int(jnp.max(support_labels)) + 1
        d_pad = _round_up(d, _LANE)
        c_pad = _round_up(n_classes, _LANE)
        tile_s, s_pad, vmem_limit = _plan_support(s, d_pad, c_pad,
                                                  store_support_features)

        x = support_images
        if (s, d) != (s_pad, d_pad):
            x = jnp.pad(x, ((0, s_pad - s), (0, d_pad - d)))
        labels = jnp.pad(support_labels.astype(jnp.int32), (0, s_pad - s),
                         constant_values=-1).reshape(1, s_pad)
        center = self._padded_center(d, d_pad)

        outs = _support_call(x, labels, center, c_pad, tile_s=tile_s,
                             normalize=self.feature_normalization is not None,
                             emit_features=store_support_features,
                             proto_dtype=self.proto_dtype,
                             vmem_limit=vmem_limit)
        if store_support_features:
            feats_p, protos_p, psq_row = outs
            self.support_features = feats_p[:s, :d]
        else:
            protos_p, psq_row = outs
            self.support_features = None

        self.support_labels = support_labels
        self.prototypes = protos_p[:n_classes, :d]
        self._protos_pad = protos_p
        self._psq_row = psq_row
        self._center_row = center
        self._n_classes = int(n_classes)
        self._d = d
        return self

    def forward(self, query_images, temperature=1.0):
        assert self._protos_pad is not None, "call process_support_set first"
        nq, d = query_images.shape
        assert d == self._d, "feature dim mismatch with support set"
        c_pad, d_pad = self._protos_pad.shape
        tile_q, nq_pad, vmem_limit = _plan_query(
            nq, d_pad, c_pad,
            jnp.dtype(self.proto_dtype).itemsize,
            jnp.dtype(query_images.dtype).itemsize)
        q = query_images
        if (nq, d) != (nq_pad, d_pad):
            # Pad only when needed (avoids an extra HBM read+write pass).
            q = jnp.pad(q, ((0, nq_pad - nq), (0, d_pad - d)))
        out = _query_call(q, self._center_row, self._protos_pad, self._psq_row,
                          tile_q=tile_q, vmem_limit=vmem_limit,
                          normalize=self.feature_normalization is not None,
                          use_softmax=self.use_softmax,
                          temperature=temperature,
                          n_classes=self._n_classes)
        return out[:nq, :self._n_classes]

    __call__ = forward


# --------------------------------------------------------------------------
if __name__ == "__main__":
    key = jax.random.PRNGKey(0)
    k1, k2 = jax.random.split(key, 2)

    D = 32   # feature dimension
    C = 4    # n_classes (n-way)
    S = 16   # n_support
    Q = 8    # n_query

    feature_centering = (0.01 * jnp.arange(D, dtype=jnp.float32)).reshape(1, D)
    support_images = jax.random.normal(k1, (S, D), dtype=jnp.float32)
    support_labels = jnp.arange(S, dtype=jnp.int32) % C
    query_images = jax.random.normal(k2, (Q, D), dtype=jnp.float32)

    # --- case 1: centering + L2 normalization + softmax ---------------------
    clf = FewShotClassifierPallas(use_softmax=True,
                                  feature_centering=feature_centering,
                                  feature_normalization=2.0)
    clf.process_support_set(support_images, support_labels, n_classes=C)
    out = jax.block_until_ready(clf.forward(query_images, temperature=1.0))

    def ref_features(x):
        c = x - feature_centering
        n = jnp.maximum(jnp.linalg.norm(c, axis=1, keepdims=True), 1e-12)
        return c / n

    sf = ref_features(support_images)
    protos = jnp.stack([sf[support_labels == i].mean(0) for i in range(C)])
    qf = ref_features(query_images)
    d_ref = jnp.sqrt(jnp.maximum(
        jnp.sum(qf ** 2, 1, keepdims=True) + jnp.sum(protos ** 2, 1)[None, :]
        - 2.0 * qf @ protos.T, 0.0))
    ref = jax.nn.softmax(-d_ref, axis=-1)

    assert out.shape == (Q, C)
    assert jnp.allclose(out, ref, atol=2e-3), "softmax path mismatch vs reference"

    # --- case 2: no centering, no normalization, raw logits -----------------
    clf2 = FewShotClassifierPallas(use_softmax=False)
    clf2.process_support_set(support_images, support_labels, n_classes=C)
    out2 = jax.block_until_ready(clf2.forward(query_images))

    protos2 = jnp.stack([support_images[support_labels == i].mean(0)
                         for i in range(C)])
    d2_ref = jnp.sqrt(jnp.maximum(
        jnp.sum(query_images ** 2, 1, keepdims=True)
        + jnp.sum(protos2 ** 2, 1)[None, :]
        - 2.0 * query_images @ protos2.T, 0.0))
    ref2 = -d2_ref

    assert out2.shape == (Q, C)
    assert jnp.allclose(out2, ref2, atol=1e-3, rtol=1e-3), \
        "logits path mismatch vs reference"

    print("KERNEL_OK")
</pallas_src>

<mosaic_0001>
module attributes {stable_mosaic.version = 11 : i64} {
  func.func @_support_kernel(%arg0: i32, %arg1: memref<1x128xf32, #tpu.memory_space<vmem>>, %arg2: memref<1x128xi32, #tpu.memory_space<vmem>>, %arg3: memref<128x128xf32, #tpu.memory_space<vmem>>, %arg4: memref<128x128xf32, #tpu.memory_space<vmem>>, %arg5: memref<1x128xf32, #tpu.memory_space<vmem>>, %arg6: memref<128x128xf32, #tpu.memory_space<vmem>>, %arg7: memref<128x1xf32, #tpu.memory_space<vmem>>) attributes {dimension_semantics = [#tpu.dimension_semantics<arbitrary>], iteration_bounds = array<i64: 1>, scalar_prefetch = 0 : i64, scratch_operands = 2 : i64, tpu.core_type = #tpu.core_type<tc>, window_params = [{pipeline_mode = #tpu.pipeline_mode<synchronous>, transform_indices = @transform_0, window_bounds = array<i64: 1, 128>}, {transform_indices = @transform_1, window_bounds = array<i64: 1, 128>}, {transform_indices = @transform_2, window_bounds = array<i64: 128, 128>}, {pipeline_mode = #tpu.pipeline_mode<synchronous>, transform_indices = @transform_3, window_bounds = array<i64: 128, 128>}, {pipeline_mode = #tpu.pipeline_mode<synchronous>, transform_indices = @transform_4, window_bounds = array<i64: 1, 128>}]} {
    %c0_i32 = arith.constant 0 : i32
    %0 = arith.cmpi eq, %arg0, %c0_i32 : i32
    %1 = arith.extui %0 : i1 to i32
    %c0_i32_0 = arith.constant 0 : i32
    %2 = arith.cmpi ne, %1, %c0_i32_0 : i32
    scf.if %2 {
      %cst_19 = arith.constant 0.000000e+00 : f32
      %33 = vector.broadcast %cst_19 : f32 to vector<128x128xf32>
      %c0_20 = arith.constant 0 : index
      %c0_21 = arith.constant 0 : index
      %34 = vector.load %arg6[%c0_20, %c0_21] : memref<128x128xf32, #tpu.memory_space<vmem>>, vector<128x128xf32>
      tpu.vector_store %arg6[%c0_20, %c0_21], %33 {strides = array<i32>} : memref<128x128xf32, #tpu.memory_space<vmem>>, vector<128x128xf32>,
      %cst_22 = arith.constant 0.000000e+00 : f32
      %35 = vector.broadcast %cst_22 : f32 to vector<128x1xf32>
      %c0_23 = arith.constant 0 : index
      %c0_24 = arith.constant 0 : index
      %36 = vector.load %arg7[%c0_23, %c0_24] : memref<128x1xf32, #tpu.memory_space<vmem>>, vector<128x1xf32>
      tpu.vector_store %arg7[%c0_23, %c0_24], %35 {strides = array<i32>} : memref<128x1xf32, #tpu.memory_space<vmem>>, vector<128x1xf32>,
    } else {
    }
    %c0 = arith.constant 0 : index
    %c0_1 = arith.constant 0 : index
    %3 = vector.load %arg1[%c0, %c0_1] : memref<1x128xf32, #tpu.memory_space<vmem>>, vector<1x128xf32>
    %c0_2 = arith.constant 0 : index
    %c0_3 = arith.constant 0 : index
    %4 = vector.load %arg3[%c0_2, %c0_3] : memref<128x128xf32, #tpu.memory_space<vmem>>, vector<128x128xf32>
    %5 = vector.broadcast %3 : vector<1x128xf32> to vector<128x128xf32>
    %6 = arith.subf %4, %5 : vector<128x128xf32>
    %7 = arith.mulf %6, %6 : vector<128x128xf32>
    %cst = arith.constant dense<0.000000e+00> : vector<128xf32>
    %8 = vector.multi_reduction <add>, %7, %cst [1] : vector<128x128xf32> to vector<128xf32>
    %9 = vector.shape_cast %8 : vector<128xf32> to vector<128x1xf32>
    %cst_4 = arith.constant 1.000000e-24 : f32
    %10 = vector.broadcast %cst_4 : f32 to vector<128x1xf32>
    %11 = arith.maximumf %9, %10 : vector<128x1xf32>
    %12 = math.rsqrt %11 : vector<128x1xf32>
    %13 = vector.broadcast %12 : vector<128x1xf32> to vector<128x128xf32>
    %14 = arith.mulf %6, %13 : vector<128x128xf32>
    %c0_5 = arith.constant 0 : index
    %c0_6 = arith.constant 0 : index
    %15 = vector.load %arg2[%c0_5, %c0_6] : memref<1x128xi32, #tpu.memory_space<vmem>>, vector<1x128xi32>
    %16 = tpu.iota {dimensions = array<i32: 0>} : vector<128x128xi32>
    %17 = vector.broadcast %15 : vector<1x128xi32> to vector<128x128xi32>
    %18 = arith.cmpi eq, %16, %17 : vector<128x128xi32>
    %19 = arith.extui %18 : vector<128x128xi1> to vector<128x128xi32>
    %20 = arith.sitofp %19 : vector<128x128xi32> to vector<128x128xf32>
    %c0_7 = arith.constant 0 : index
    %c0_8 = arith.constant 0 : index
    %21 = vector.load %arg6[%c0_7, %c0_8] : memref<128x128xf32, #tpu.memory_space<vmem>>, vector<128x128xf32>
    %cst_9 = arith.constant dense<0.000000e+00> : vector<128x128xf32>
    %22 = tpu.matmul %20, %14, %cst_9 {dimension_numbers = #tpu.dot_dimension_numbers<[1], [0], [0], [1], [0, 0, 1, 1], [], []>} : vector<128x128xf32>, vector<128x128xf32>, vector<128x128xf32> -> vector<128x128xf32>
    %23 = arith.addf %21, %22 : vector<128x128xf32>
    %c0_10 = arith.constant 0 : index
    %c0_11 = arith.constant 0 : index
    %24 = vector.load %arg6[%c0_10, %c0_11] : memref<128x128xf32, #tpu.memory_space<vmem>>, vector<128x128xf32>
    tpu.vector_store %arg6[%c0_10, %c0_11], %23 {strides = array<i32>} : memref<128x128xf32, #tpu.memory_space<vmem>>, vector<128x128xf32>,
    %c0_12 = arith.constant 0 : index
    %c0_13 = arith.constant 0 : index
    %25 = vector.load %arg7[%c0_12, %c0_13] : memref<128x1xf32, #tpu.memory_space<vmem>>, vector<128x1xf32>
    %cst_14 = arith.constant dense<0.000000e+00> : vector<128xf32>
    %26 = vector.multi_reduction <add>, %20, %cst_14 [1] : vector<128x128xf32> to vector<128xf32>
    %27 = vector.shape_cast %26 : vector<128xf32> to vector<128x1xf32>
    %28 = arith.addf %25, %27 : vector<128x1xf32>
    %c0_15 = arith.constant 0 : index
    %c0_16 = arith.constant 0 : index
    %29 = vector.load %arg7[%c0_15, %c0_16] : memref<128x1xf32, #tpu.memory_space<vmem>>, vector<128x1xf32>
    tpu.vector_store %arg7[%c0_15, %c0_16], %28 {strides = array<i32>} : memref<128x1xf32, #tpu.memory_space<vmem>>, vector<128x1xf32>,
    %c0_i32_17 = arith.constant 0 : i32
    %30 = arith.cmpi eq, %arg0, %c0_i32_17 : i32
    %31 = arith.extui %30 : i1 to i32
    %c0_i32_18 = arith.constant 0 : i32
    %32 = arith.cmpi ne, %31, %c0_i32_18 : i32
    scf.if %32 {
      %c0_19 = arith.constant 0 : index
      %c0_20 = arith.constant 0 : index
      %33 = vector.load %arg6[%c0_19, %c0_20] : memref<128x128xf32, #tpu.memory_space<vmem>>, vector<128x128xf32>
      %c0_21 = arith.constant 0 : index
      %c0_22 = arith.constant 0 : index
      %34 = vector.load %arg7[%c0_21, %c0_22] : memref<128x1xf32, #tpu.memory_space<vmem>>, vector<128x1xf32>
      %cst_23 = arith.constant 1.000000e+00 : f32
      %35 = vector.broadcast %cst_23 : f32 to vector<128x1xf32>
      %36 = arith.maximumf %34, %35 : vector<128x1xf32>
      %37 = vector.broadcast %36 : vector<128x1xf32> to vector<128x128xf32>
      %38 = arith.divf %33, %37 : vector<128x128xf32>
      %c0_24 = arith.constant 0 : index
      %c0_25 = arith.constant 0 : index
      %39 = vector.load %arg4[%c0_24, %c0_25] : memref<128x128xf32, #tpu.memory_space<vmem>>, vector<128x128xf32>
      tpu.vector_store %arg4[%c0_24, %c0_25], %38 {strides = array<i32>} : memref<128x128xf32, #tpu.memory_space<vmem>>, vector<128x128xf32>,
      %cst_26 = arith.constant 1.000000e+00 : f32
      %40 = vector.broadcast %cst_26 : f32 to vector<1x128xf32>
      %41 = arith.mulf %38, %38 : vector<128x128xf32>
      %cst_27 = arith.constant dense<0.000000e+00> : vector<1x128xf32>
      %42 = tpu.matmul %40, %41, %cst_27 {dimension_numbers = #tpu.dot_dimension_numbers<[1], [1], [0], [0], [0, 0, 1, 0], [], []>} : vector<1x128xf32>, vector<128x128xf32>, vector<1x128xf32> -> vector<1x128xf32>
      %c0_28 = arith.constant 0 : index
      %c0_29 = arith.constant 0 : index
      %43 = vector.load %arg5[%c0_28, %c0_29] : memref<1x128xf32, #tpu.memory_space<vmem>>, vector<1x128xf32>
      tpu.vector_store %arg5[%c0_28, %c0_29], %42 {strides = array<i32>} : memref<1x128xf32, #tpu.memory_space<vmem>>, vector<1x128xf32>,
    } else {
    }
    return
  }
  func.func @transform_0(%arg0: i32) -> (i32, i32) {
    %c0_i32 = arith.constant 0 : i32
    %c0_i32_0 = arith.constant 0 : i32
    %c0_i32_1 = arith.constant 0 : i32
    return %c0_i32, %c0_i32_0 : i32, i32
  }
  func.func @transform_1(%arg0: i32) -> (i32, i32) {
    %c0_i32 = arith.constant 0 : i32
    %c0_i32_0 = arith.constant 0 : i32
    return %c0_i32, %arg0 : i32, i32
  }
  func.func @transform_2(%arg0: i32) -> (i32, i32) {
    %c0_i32 = arith.constant 0 : i32
    %c0_i32_0 = arith.constant 0 : i32
    return %arg0, %c0_i32 : i32, i32
  }
  func.func @transform_3(%arg0: i32) -> (i32, i32) {
    %c0_i32 = arith.constant 0 : i32
    %c0_i32_0 = arith.constant 0 : i32
    %c0_i32_1 = arith.constant 0 : i32
    return %c0_i32, %c0_i32_0 : i32, i32
  }
  func.func @transform_4(%arg0: i32) -> (i32, i32) {
    %c0_i32 = arith.constant 0 : i32
    %c0_i32_0 = arith.constant 0 : i32
    %c0_i32_1 = arith.constant 0 : i32
    return %c0_i32, %c0_i32_0 : i32, i32
  }
}

</mosaic_0001>

<llo_original>
// kernel: tpu_custom_call.1
$region0: #{tpu_custom_call.1}
  #allocation0 [shape = 'u32[]', space=smem, size = 0x4, offset = 0x4, fixed_abs, tag = 'smem constant byte address 0x4 - core index']
  #allocation1 [shape = 'u32[144,128]{1,0:T(1,128)}', space=vmem, size = 0x12000, scoped, tag = 'internal scratch']
  #allocation2 [shape = 'f32[128,128]{1,0:T(8,128)}', space=vmem, size = 0x10000, scoped, tag = 'scratch operand']
  #allocation3 [shape = 'f32[128,1]{1,0:T(8,128)}', space=vmem, size = 0x10000, scoped, tag = 'scratch operand']
  %s0 = inlined_call_operand.hbm [shape: f32[1,128], index: 0, kind: input, shape index: {}]
  %s1 = inlined_call_operand.vmem [shape: s32[1,128], index: 1, kind: input, shape index: {}]
  %s2 = inlined_call_operand.hbm [shape: f32[128,128], index: 2, kind: input, shape index: {}]
  %s3 = inlined_call_operand.hbm [shape: f32[128,128], index: 3, kind: output, shape index: {0}]
  %s4 = inlined_call_operand.hbm [shape: f32[1,128], index: 4, kind: output, shape index: {1}]
  %5 = xla_tuple %s3, %s4
  %s6 = sld [smem:[#allocation0]]
  $region46: #{tpu_custom_call.1} parent=0
    _
  %s8 = ssub.s32 1, %s6
  %s9 = scalar_select 0, %s8, %s6
  $region1: #{tpu_custom_call.1} parent=0
    #allocation4 [shape = 'u8[512]{0}', space=vmem, size = 0x400, scoped, tag = 'input window, operand 0, single buffered']
    #allocation5 [shape = 's32[1]{0}', space=sflag, size = 0x4, scoped, tag = 'scoped memory for tpu_custom_call.1']
    #allocation6 [shape = 's32[1]{0}', space=sflag, size = 0x4, scoped, tag = 'scoped memory for tpu_custom_call.1']
    #allocation7 [shape = 'u8[65536]{0}', space=vmem, size = 0x10000, scoped, tag = 'input window, operand 2, single buffered']
    #allocation8 [shape = 's32[1]{0}', space=sflag, size = 0x4, scoped, tag = 'scoped memory for tpu_custom_call.1']
    #allocation9 [shape = 'u8[65536]{0}', space=vmem, size = 0x10000, scoped, tag = 'output window, operand 0, single buffered']
    #allocation10 [shape = 'u8[512]{0}', space=vmem, size = 0x400, scoped, tag = 'output window, operand 1, single buffered']
    #allocation11 [shape = 's32[1]{0}', space=sflag, size = 0x4, scoped, tag = 'scoped memory for tpu_custom_call.1']
    %10 = vsyncpa [#allocation5], 0
    %11 = vsyncpa [#allocation8], 0
    %12 = vsyncpa [#allocation6], 0
    %13 = vsyncpa [#allocation11], 0
    // Predicated region
    $region2: #{tpu_custom_call.1} parent=1 // pred_check
      _
    $region3: #{tpu_custom_call.1} parent=1 // pred_check_branch
      %15 = sbr.rel (0) target = $region5
    $region4: #{tpu_custom_call.1} parent=1 // pred_region
      %s17 = ssub.s32 16, 16
      %18 = vsyncadd [#allocation5], %s17
      %s20 = sshll.u32 [#allocation4], 4
      %s21 = int_to_ptr.vmem [resolvable:$true] %s20
      %23 = dma.hbm_to_vmem [thread:$0]  %s0, 16, %s21, [#allocation5]
    $region5: #{tpu_custom_call.1} parent=1 // pred_fallthru
      _
    // Predicated region
    $region6: #{tpu_custom_call.1} parent=1 // pred_check
      _
    $region7: #{tpu_custom_call.1} parent=1 // pred_check_branch
      %25 = sbr.rel (0) target = $region9
    $region8: #{tpu_custom_call.1} parent=1 // pred_region
      _
    $region9: #{tpu_custom_call.1} parent=1 // pred_fallthru
      _
    // Predicated region
    $region10: #{tpu_custom_call.1} parent=1 // pred_check
      _
    $region11: #{tpu_custom_call.1} parent=1 // pred_check_branch
      %27 = sbr.rel (0) target = $region13
    $region12: #{tpu_custom_call.1} parent=1 // pred_region
      %s29 = ssub.s32 2048, 2048
      %30 = vsyncadd [#allocation8], %s29
      %s31 = sshll.u32 [#allocation7], 4
      %s32 = int_to_ptr.vmem [resolvable:$true] %s31
      %37 = dma.hbm_to_vmem [thread:$0]  %s2, 2048, %s32, [#allocation8], 128, 128, 8
    $region13: #{tpu_custom_call.1} parent=1 // pred_fallthru
      _
    // Predicated region
    $region14: #{tpu_custom_call.1} parent=1 // pred_check
      _
    $region15: #{tpu_custom_call.1} parent=1 // pred_check_branch
      %39 = sbr.rel (0) target = $region17
    $region16: #{tpu_custom_call.1} parent=1 // pred_region
      %40 = dma.done [#allocation5], 16
    $region17: #{tpu_custom_call.1} parent=1 // pred_fallthru
      _
    // Predicated region
    $region18: #{tpu_custom_call.1} parent=1 // pred_check
      _
    $region19: #{tpu_custom_call.1} parent=1 // pred_check_branch
      %42 = sbr.rel (0) target = $region21
    $region20: #{tpu_custom_call.1} parent=1 // pred_region
      %43 = dma.done [#allocation8], 2048
    $region21: #{tpu_custom_call.1} parent=1 // pred_fallthru
      _
    %p44 = scmp.eq.s32.totalorder 0, 0
    // Predicated region
    $region22: #{tpu_custom_call.1} parent=1 // pred_check
      %p45 = pneg %p44
    $region23: #{tpu_custom_call.1} parent=1 // pred_check_branch
      %47 = sbr.rel (%p45) target = $region25
    $region24: #{tpu_custom_call.1} parent=1 // pred_region
      %48 = vst [vmem:[#allocation2] sm:$0xff] 0.0
      %49 = vst [vmem:[#allocation2 + $0x8] sm:$0xff] 0.0
      %50 = vst [vmem:[#allocation2 + $0x10] sm:$0xff] 0.0
      %51 = vst [vmem:[#allocation2 + $0x18] sm:$0xff] 0.0
      %52 = vst [vmem:[#allocation2 + $0x20] sm:$0xff] 0.0
      %53 = vst [vmem:[#allocation2 + $0x28] sm:$0xff] 0.0
      %54 = vst [vmem:[#allocation2 + $0x30] sm:$0xff] 0.0
      %55 = vst [vmem:[#allocation2 + $0x38] sm:$0xff] 0.0
      %56 = vst [vmem:[#allocation2 + $0x40] sm:$0xff] 0.0
      %57 = vst [vmem:[#allocation2 + $0x48] sm:$0xff] 0.0
      %58 = vst [vmem:[#allocation2 + $0x50] sm:$0xff] 0.0
      %59 = vst [vmem:[#allocation2 + $0x58] sm:$0xff] 0.0
      %60 = vst [vmem:[#allocation2 + $0x60] sm:$0xff] 0.0
      %61 = vst [vmem:[#allocation2 + $0x68] sm:$0xff] 0.0
      %62 = vst [vmem:[#allocation2 + $0x70] sm:$0xff] 0.0
      %63 = vst [vmem:[#allocation2 + $0x78] sm:$0xff] 0.0
      %vm64 = vcmask 7168
      %65 = vst.msk [vmem:[#allocation3] sm:$0xff] %vm64, 0.0
      %66 = vst.msk [vmem:[#allocation3 + $0x8] sm:$0xff] %vm64, 0.0
      %67 = vst.msk [vmem:[#allocation3 + $0x10] sm:$0xff] %vm64, 0.0
      %68 = vst.msk [vmem:[#allocation3 + $0x18] sm:$0xff] %vm64, 0.0
      %69 = vst.msk [vmem:[#allocation3 + $0x20] sm:$0xff] %vm64, 0.0
      %70 = vst.msk [vmem:[#allocation3 + $0x28] sm:$0xff] %vm64, 0.0
      %71 = vst.msk [vmem:[#allocation3 + $0x30] sm:$0xff] %vm64, 0.0
      %72 = vst.msk [vmem:[#allocation3 + $0x38] sm:$0xff] %vm64, 0.0
      %73 = vst.msk [vmem:[#allocation3 + $0x40] sm:$0xff] %vm64, 0.0
      %74 = vst.msk [vmem:[#allocation3 + $0x48] sm:$0xff] %vm64, 0.0
      %75 = vst.msk [vmem:[#allocation3 + $0x50] sm:$0xff] %vm64, 0.0
      %76 = vst.msk [vmem:[#allocation3 + $0x58] sm:$0xff] %vm64, 0.0
      %77 = vst.msk [vmem:[#allocation3 + $0x60] sm:$0xff] %vm64, 0.0
      %78 = vst.msk [vmem:[#allocation3 + $0x68] sm:$0xff] %vm64, 0.0
      %79 = vst.msk [vmem:[#allocation3 + $0x70] sm:$0xff] %vm64, 0.0
      %80 = vst.msk [vmem:[#allocation3 + $0x78] sm:$0xff] %vm64, 0.0
    $region25: #{tpu_custom_call.1} parent=1 // pred_fallthru
      _
    %v81 = vld [vmem:[#allocation4] sm:$0x1]
    %v82 = vld [vmem:[#allocation7] sm:$0xff]
    %v83 = vld [vmem:[#allocation7 + $0x8] sm:$0xff]
    %v84 = vld [vmem:[#allocation7 + $0x10] sm:$0xff]
    %v85 = vld [vmem:[#allocation7 + $0x18] sm:$0xff]
    %v86 = vld [vmem:[#allocation7 + $0x20] sm:$0xff]
    %v87 = vld [vmem:[#allocation7 + $0x28] sm:$0xff]
    %v88 = vld [vmem:[#allocation7 + $0x30] sm:$0xff]
    %v89 = vld [vmem:[#allocation7 + $0x38] sm:$0xff]
    %v90 = vld [vmem:[#allocation7 + $0x40] sm:$0xff]
    %v91 = vld [vmem:[#allocation7 + $0x48] sm:$0xff]
    %v92 = vld [vmem:[#allocation7 + $0x50] sm:$0xff]
    %v93 = vld [vmem:[#allocation7 + $0x58] sm:$0xff]
    %v94 = vld [vmem:[#allocation7 + $0x60] sm:$0xff]
    %v95 = vld [vmem:[#allocation7 + $0x68] sm:$0xff]
    %v96 = vld [vmem:[#allocation7 + $0x70] sm:$0xff]
    %v97 = vld [vmem:[#allocation7 + $0x78] sm:$0xff]
    %v99 = vlaneseq
    %v100 = vshrl.u32 %v99, 7
    %v101 = vsub.s32 0, %v100
    %v102 = vrot.slane %v81, %v101
    %v104 = vsub.f32 %v82, %v102
    %v105 = vsub.f32 %v83, %v102
    %v106 = vsub.f32 %v84, %v102
    %v107 = vsub.f32 %v85, %v102
    %v108 = vsub.f32 %v86, %v102
    %v109 = vsub.f32 %v87, %v102
    %v110 = vsub.f32 %v88, %v102
    %v111 = vsub.f32 %v89, %v102
    %v112 = vsub.f32 %v90, %v102
    %v113 = vsub.f32 %v91, %v102
    %v114 = vsub.f32 %v92, %v102
    %v115 = vsub.f32 %v93, %v102
    %v116 = vsub.f32 %v94, %v102
    %v117 = vsub.f32 %v95, %v102
    %v118 = vsub.f32 %v96, %v102
    %v119 = vsub.f32 %v97, %v102
    %v120 = vmul.f32 %v104, %v104
    %v121 = vmul.f32 %v105, %v105
    %v122 = vmul.f32 %v106, %v106
    %v123 = vmul.f32 %v107, %v107
    %v124 = vmul.f32 %v108, %v108
    %v125 = vmul.f32 %v109, %v109
    %v126 = vmul.f32 %v110, %v110
    %v127 = vmul.f32 %v111, %v111
    %v128 = vmul.f32 %v112, %v112
    %v129 = vmul.f32 %v113, %v113
    %v130 = vmul.f32 %v114, %v114
    %v131 = vmul.f32 %v115, %v115
    %v132 = vmul.f32 %v116, %v116
    %v133 = vmul.f32 %v117, %v117
    %v134 = vmul.f32 %v118, %v118
    %v135 = vmul.f32 %v119, %v119
    %136 = vadd.xlane.f32.xlu0 %v120
    %v137 = vpop.xlane.xlu0 %136
    %138 = vadd.xlane.f32.xlu0 %v121
    %v139 = vpop.xlane.xlu0 %138
    %140 = vadd.xlane.f32.xlu0 %v122
    %v141 = vpop.xlane.xlu0 %140
    %142 = vadd.xlane.f32.xlu0 %v123
    %v143 = vpop.xlane.xlu0 %142
    %144 = vadd.xlane.f32.xlu0 %v124
    %v145 = vpop.xlane.xlu0 %144
    %146 = vadd.xlane.f32.xlu0 %v125
    %v147 = vpop.xlane.xlu0 %146
    %148 = vadd.xlane.f32.xlu0 %v126
    %v149 = vpop.xlane.xlu0 %148
    %150 = vadd.xlane.f32.xlu0 %v127
    %v151 = vpop.xlane.xlu0 %150
    %152 = vadd.xlane.f32.xlu0 %v128
    %v153 = vpop.xlane.xlu0 %152
    %154 = vadd.xlane.f32.xlu0 %v129
    %v155 = vpop.xlane.xlu0 %154
    %156 = vadd.xlane.f32.xlu0 %v130
    %v157 = vpop.xlane.xlu0 %156
    %158 = vadd.xlane.f32.xlu0 %v131
    %v159 = vpop.xlane.xlu0 %158
    %160 = vadd.xlane.f32.xlu0 %v132
    %v161 = vpop.xlane.xlu0 %160
    %162 = vadd.xlane.f32.xlu0 %v133
    %v163 = vpop.xlane.xlu0 %162
    %164 = vadd.xlane.f32.xlu0 %v134
    %v165 = vpop.xlane.xlu0 %164
    %166 = vadd.xlane.f32.xlu0 %v135
    %v167 = vpop.xlane.xlu0 %166
    %v168 = vmax.f32 %v137, 1e-24
    %v169 = vmax.f32 %v139, 1e-24
    %v170 = vmax.f32 %v141, 1e-24
    %v171 = vmax.f32 %v143, 1e-24
    %v172 = vmax.f32 %v145, 1e-24
    %v173 = vmax.f32 %v147, 1e-24
    %v174 = vmax.f32 %v149, 1e-24
    %v175 = vmax.f32 %v151, 1e-24
    %v176 = vmax.f32 %v153, 1e-24
    %v177 = vmax.f32 %v155, 1e-24
    %v178 = vmax.f32 %v157, 1e-24
    %v179 = vmax.f32 %v159, 1e-24
    %v180 = vmax.f32 %v161, 1e-24
    %v181 = vmax.f32 %v163, 1e-24
    %v182 = vmax.f32 %v165, 1e-24
    %v183 = vmax.f32 %v167, 1e-24
    %v184 = vrsqrt.pop %v168
    %v185 = vrsqrt.pop %v169
    %v186 = vrsqrt.pop %v170
    %v187 = vrsqrt.pop %v171
    %v188 = vrsqrt.pop %v172
    %v189 = vrsqrt.pop %v173
    %v190 = vrsqrt.pop %v174
    %v191 = vrsqrt.pop %v175
    %v192 = vrsqrt.pop %v176
    %v193 = vrsqrt.pop %v177
    %v194 = vrsqrt.pop %v178
    %v195 = vrsqrt.pop %v179
    %v196 = vrsqrt.pop %v180
    %v197 = vrsqrt.pop %v181
    %v198 = vrsqrt.pop %v182
    %v199 = vrsqrt.pop %v183
    %v200 = vmul.f32 %v104, %v184
    %v201 = vmul.f32 %v105, %v185
    %v202 = vmul.f32 %v106, %v186
    %v203 = vmul.f32 %v107, %v187
    %v204 = vmul.f32 %v108, %v188
    %v205 = vmul.f32 %v109, %v189
    %v206 = vmul.f32 %v110, %v190
    %v207 = vmul.f32 %v111, %v191
    %v208 = vmul.f32 %v112, %v192
    %v209 = vmul.f32 %v113, %v193
    %v210 = vmul.f32 %v114, %v194
    %v211 = vmul.f32 %v115, %v195
    %v212 = vmul.f32 %v116, %v196
    %v213 = vmul.f32 %v117, %v197
    %v214 = vmul.f32 %v118, %v198
    %v215 = vmul.f32 %v119, %v199
    %v216 = vld [vmem:[%s1] sm:$0x1]
    %v217 = vlaneseq
    %v218 = vshrl.u32 %v217, 7
    %v219 = vadd.s32 %v218, 8
    %v220 = vadd.s32 %v218, 16
    %v221 = vadd.s32 %v218, 24
    %v222 = vadd.s32 %v218, 32
    %v223 = vadd.s32 %v218, 40
    %v224 = vadd.s32 %v218, 48
    %v225 = vadd.s32 %v218, 56
    %v226 = vadd.s32 %v218, 64
    %v227 = vadd.s32 %v218, 72
    %v228 = vadd.s32 %v218, 80
    %v229 = vadd.s32 %v218, 88
    %v230 = vadd.s32 %v218, 96
    %v231 = vadd.s32 %v218, 104
    %v232 = vadd.s32 %v218, 112
    %v233 = vadd.s32 %v218, 120
    %v234 = vlaneseq
    %v235 = vshrl.u32 %v234, 7
    %v236 = vsub.s32 0, %v235
    %v237 = vrot.slane %v216, %v236
    %vm238 = vcmp.eq.s32.totalorder %v218, %v237
    %vm239 = vcmp.eq.s32.totalorder %v219, %v237
    %vm240 = vcmp.eq.s32.totalorder %v220, %v237
    %vm241 = vcmp.eq.s32.totalorder %v221, %v237
    %vm242 = vcmp.eq.s32.totalorder %v222, %v237
    %vm243 = vcmp.eq.s32.totalorder %v223, %v237
    %vm244 = vcmp.eq.s32.totalorder %v224, %v237
    %vm245 = vcmp.eq.s32.totalorder %v225, %v237
    %vm246 = vcmp.eq.s32.totalorder %v226, %v237
    %vm247 = vcmp.eq.s32.totalorder %v227, %v237
    %vm248 = vcmp.eq.s32.totalorder %v228, %v237
    %vm249 = vcmp.eq.s32.totalorder %v229, %v237
    %vm250 = vcmp.eq.s32.totalorder %v230, %v237
    %vm251 = vcmp.eq.s32.totalorder %v231, %v237
    %vm252 = vcmp.eq.s32.totalorder %v232, %v237
    %vm253 = vcmp.eq.s32.totalorder %v233, %v237
    %v254 = vsel %vm238, 1, 0
    %v255 = vsel %vm239, 1, 0
    %v256 = vsel %vm240, 1, 0
    %v257 = vsel %vm241, 1, 0
    %v258 = vsel %vm242, 1, 0
    %v259 = vsel %vm243, 1, 0
    %v260 = vsel %vm244, 1, 0
    %v261 = vsel %vm245, 1, 0
    %v262 = vsel %vm246, 1, 0
    %v263 = vsel %vm247, 1, 0
    %v264 = vsel %vm248, 1, 0
    %v265 = vsel %vm249, 1, 0
    %v266 = vsel %vm250, 1, 0
    %v267 = vsel %vm251, 1, 0
    %v268 = vsel %vm252, 1, 0
    %v269 = vsel %vm253, 1, 0
    %v270 = vcvt.s32.f32 %v254
    %v271 = vcvt.s32.f32 %v255
    %v272 = vcvt.s32.f32 %v256
    %v273 = vcvt.s32.f32 %v257
    %v274 = vcvt.s32.f32 %v258
    %v275 = vcvt.s32.f32 %v259
    %v276 = vcvt.s32.f32 %v260
    %v277 = vcvt.s32.f32 %v261
    %v278 = vcvt.s32.f32 %v262
    %v279 = vcvt.s32.f32 %v263
    %v280 = vcvt.s32.f32 %v264
    %v281 = vcvt.s32.f32 %v265
    %v282 = vcvt.s32.f32 %v266
    %v283 = vcvt.s32.f32 %v267
    %v284 = vcvt.s32.f32 %v268
    %v285 = vcvt.s32.f32 %v269
    %v286 = vld [vmem:[#allocation2] sm:$0xff]
    %v287 = vld [vmem:[#allocation2 + $0x8] sm:$0xff]
    %v288 = vld [vmem:[#allocation2 + $0x10] sm:$0xff]
    %v289 = vld [vmem:[#allocation2 + $0x18] sm:$0xff]
    %v290 = vld [vmem:[#allocation2 + $0x20] sm:$0xff]
    %v291 = vld [vmem:[#allocation2 + $0x28] sm:$0xff]
    %v292 = vld [vmem:[#allocation2 + $0x30] sm:$0xff]
    %v293 = vld [vmem:[#allocation2 + $0x38] sm:$0xff]
    %v294 = vld [vmem:[#allocation2 + $0x40] sm:$0xff]
    %v295 = vld [vmem:[#allocation2 + $0x48] sm:$0xff]
    %v296 = vld [vmem:[#allocation2 + $0x50] sm:$0xff]
    %v297 = vld [vmem:[#allocation2 + $0x58] sm:$0xff]
    %v298 = vld [vmem:[#allocation2 + $0x60] sm:$0xff]
    %v299 = vld [vmem:[#allocation2 + $0x68] sm:$0xff]
    %v300 = vld [vmem:[#allocation2 + $0x70] sm:$0xff]
    %v301 = vld [vmem:[#allocation2 + $0x78] sm:$0xff]
    %302 = vmatprep.subr.mxu0 0.0
    %303 = vmatpush1.msra.mxu0 %v200
    %304 = vmatprep.subr.mxu0 0.0
    %305 = vmatpush1.msra.mxu0 %v201
    %306 = vmatprep.subr.mxu0 0.0
    %307 = vmatpush1.msra.mxu0 %v202
    %308 = vmatprep.subr.mxu0 0.0
    %309 = vmatpush1.msra.mxu0 %v203
    %310 = vmatprep.subr.mxu0 0.0
    %311 = vmatpush1.msra.mxu0 %v204
    %312 = vmatprep.subr.mxu0 0.0
    %313 = vmatpush1.msra.mxu0 %v205
    %314 = vmatprep.subr.mxu0 0.0
    %315 = vmatpush1.msra.mxu0 %v206
    %316 = vmatprep.subr.mxu0 0.0
    %317 = vmatpush1.msra.mxu0 %v207
    %318 = vmatprep.subr.mxu0 0.0
    %319 = vmatpush1.msra.mxu0 %v208
    %320 = vmatprep.subr.mxu0 0.0
    %321 = vmatpush1.msra.mxu0 %v209
    %322 = vmatprep.subr.mxu0 0.0
    %323 = vmatpush1.msra.mxu0 %v210
    %324 = vmatprep.subr.mxu0 0.0
    %325 = vmatpush1.msra.mxu0 %v211
    %326 = vmatprep.subr.mxu0 0.0
    %327 = vmatpush1.msra.mxu0 %v212
    %328 = vmatprep.subr.mxu0 0.0
    %329 = vmatpush1.msra.mxu0 %v213
    %330 = vmatprep.subr.mxu0 0.0
    %331 = vmatpush1.msra.mxu0 %v214
    %332 = vmatprep.subr.mxu0 0.0
    %333 = vmatpush1.msra.mxu0 %v215
    %334 = vmatprep.subr.mxu0 0.0
    %335 = vmatpush1.msra.mxu0 0.0
    %336 = vmatprep.subr.mxu0 0.0
    %337 = vmatpush1.msra.mxu0 0.0
    %338 = vmatprep.subr.mxu0 0.0
    %339 = vmatpush1.msra.mxu0 0.0
    %340 = vmatprep.subr.mxu0 0.0
    %341 = vmatpush1.msra.mxu0 0.0
    %342 = vmatprep.subr.mxu0 0.0
    %343 = vmatpush1.msra.mxu0 0.0
    %344 = vmatprep.subr.mxu0 0.0
    %345 = vmatpush1.msra.mxu0 0.0
    %346 = vmatprep.subr.mxu0 0.0
    %347 = vmatpush1.msra.mxu0 0.0
    %348 = vmatprep.subr.mxu0 0.0
    %349 = vmatpush1.msra.mxu0 0.0
    %350 = vmatprep.subr.mxu0 0.0
    %351 = vmatpush1.msra.mxu0 0.0
    %352 = vmatprep.subr.mxu0 0.0
    %353 = vmatpush1.msra.mxu0 0.0
    %354 = vmatprep.subr.mxu0 0.0
    %355 = vmatpush1.msra.mxu0 0.0
    %356 = vmatprep.subr.mxu0 0.0
    %357 = vmatpush1.msra.mxu0 0.0
    %358 = vmatprep.subr.mxu0 0.0
    %359 = vmatpush1.msra.mxu0 0.0
    %360 = vmatprep.subr.mxu0 0.0
    %361 = vmatpush1.msra.mxu0 0.0
    %362 = vmatprep.subr.mxu0 0.0
    %363 = vmatpush1.msra.mxu0 0.0
    %364 = vmatprep.subr.mxu0 0.0
    %365 = vmatpush1.msra.mxu0 0.0
    %366 = vmatprep.mubr.f32.mxu0 0.0
    %367 = vmatmul.mubr.f32.gmra.mrb[0].mxu0 %v270
    %v368 = vpop.f32.mrb[0].mxu0
    %v369 = vadd.f32 0.0, %v368
    %v370 = vpop.f32.mrb[0].mxu0
    %371 = vmatprep.mubr.f32.mxu0 0.0
    %372 = vmatmul.mubr.f32.gmra.mrb[0].mxu0 %v271
    %v373 = vpop.f32.mrb[0].mxu0
    %v374 = vadd.f32 0.0, %v373
    %v375 = vpop.f32.mrb[0].mxu0
    %376 = vmatprep.mubr.f32.mxu0 0.0
    %377 = vmatmul.mubr.f32.gmra.mrb[0].mxu0 %v272
    %v378 = vpop.f32.mrb[0].mxu0
    %v379 = vadd.f32 0.0, %v378
    %v380 = vpop.f32.mrb[0].mxu0
    %381 = vmatprep.mubr.f32.mxu0 0.0
    %382 = vmatmul.mubr.f32.gmra.mrb[0].mxu0 %v273
    %v383 = vpop.f32.mrb[0].mxu0
    %v384 = vadd.f32 0.0, %v383
    %v385 = vpop.f32.mrb[0].mxu0
    %386 = vmatprep.mubr.f32.mxu0 0.0
    %387 = vmatmul.mubr.f32.gmra.mrb[0].mxu0 %v274
    %v388 = vpop.f32.mrb[0].mxu0
    %v389 = vadd.f32 0.0, %v388
    %v390 = vpop.f32.mrb[0].mxu0
    %391 = vmatprep.mubr.f32.mxu0 0.0
    %392 = vmatmul.mubr.f32.gmra.mrb[0].mxu0 %v275
    %v393 = vpop.f32.mrb[0].mxu0
    %v394 = vadd.f32 0.0, %v393
    %v395 = vpop.f32.mrb[0].mxu0
    %396 = vmatprep.mubr.f32.mxu0 0.0
    %397 = vmatmul.mubr.f32.gmra.mrb[0].mxu0 %v276
    %v398 = vpop.f32.mrb[0].mxu0
    %v399 = vadd.f32 0.0, %v398
    %v400 = vpop.f32.mrb[0].mxu0
    %401 = vmatprep.mubr.f32.mxu0 0.0
    %402 = vmatmul.mubr.f32.gmra.mrb[0].mxu0 %v277
    %v403 = vpop.f32.mrb[0].mxu0
    %v404 = vadd.f32 0.0, %v403
    %v405 = vpop.f32.mrb[0].mxu0
    %406 = vmatprep.mubr.f32.mxu0 0.0
    %407 = vmatmul.mubr.f32.gmra.mrb[0].mxu0 %v278
    %v408 = vpop.f32.mrb[0].mxu0
    %v409 = vadd.f32 0.0, %v408
    %v410 = vpop.f32.mrb[0].mxu0
    %411 = vmatprep.mubr.f32.mxu0 0.0
    %412 = vmatmul.mubr.f32.gmra.mrb[0].mxu0 %v279
    %v413 = vpop.f32.mrb[0].mxu0
    %v414 = vadd.f32 0.0, %v413
    %v415 = vpop.f32.mrb[0].mxu0
    %416 = vmatprep.mubr.f32.mxu0 0.0
    %417 = vmatmul.mubr.f32.gmra.mrb[0].mxu0 %v280
    %v418 = vpop.f32.mrb[0].mxu0
    %v419 = vadd.f32 0.0, %v418
    %v420 = vpop.f32.mrb[0].mxu0
    %421 = vmatprep.mubr.f32.mxu0 0.0
    %422 = vmatmul.mubr.f32.gmra.mrb[0].mxu0 %v281
    %v423 = vpop.f32.mrb[0].mxu0
    %v424 = vadd.f32 0.0, %v423
    %v425 = vpop.f32.mrb[0].mxu0
    %426 = vmatprep.mubr.f32.mxu0 0.0
    %427 = vmatmul.mubr.f32.gmra.mrb[0].mxu0 %v282
    %v428 = vpop.f32.mrb[0].mxu0
    %v429 = vadd.f32 0.0, %v428
    %v430 = vpop.f32.mrb[0].mxu0
    %431 = vmatprep.mubr.f32.mxu0 0.0
    %432 = vmatmul.mubr.f32.gmra.mrb[0].mxu0 %v283
    %v433 = vpop.f32.mrb[0].mxu0
    %v434 = vadd.f32 0.0, %v433
    %v435 = vpop.f32.mrb[0].mxu0
    %436 = vmatprep.mubr.f32.mxu0 0.0
    %437 = vmatmul.mubr.f32.gmra.mrb[0].mxu0 %v284
    %v438 = vpop.f32.mrb[0].mxu0
    %v439 = vadd.f32 0.0, %v438
    %v440 = vpop.f32.mrb[0].mxu0
    %441 = vmatprep.mubr.f32.mxu0 0.0
    %442 = vmatmul.mubr.f32.gmra.mrb[0].mxu0 %v285
    %v443 = vpop.f32.mrb[0].mxu0
    %v444 = vadd.f32 0.0, %v443
    %v445 = vpop.f32.mrb[0].mxu0
    %446 = vdwg.mxu0
    %v447 = vadd.f32 %v286, %v369
    %v448 = vadd.f32 %v287, %v374
    %v449 = vadd.f32 %v288, %v379
    %v450 = vadd.f32 %v289, %v384
    %v451 = vadd.f32 %v290, %v389
    %v452 = vadd.f32 %v291, %v394
    %v453 = vadd.f32 %v292, %v399
    %v454 = vadd.f32 %v293, %v404
    %v455 = vadd.f32 %v294, %v409
    %v456 = vadd.f32 %v295, %v414
    %v457 = vadd.f32 %v296, %v419
    %v458 = vadd.f32 %v297, %v424
    %v459 = vadd.f32 %v298, %v429
    %v460 = vadd.f32 %v299, %v434
    %v461 = vadd.f32 %v300, %v439
    %v462 = vadd.f32 %v301, %v444
    %463 = vst [vmem:[#allocation2] sm:$0xff] %v447
    %464 = vst [vmem:[#allocation2 + $0x8] sm:$0xff] %v448
    %465 = vst [vmem:[#allocation2 + $0x10] sm:$0xff] %v449
    %466 = vst [vmem:[#allocation2 + $0x18] sm:$0xff] %v450
    %467 = vst [vmem:[#allocation2 + $0x20] sm:$0xff] %v451
    %468 = vst [vmem:[#allocation2 + $0x28] sm:$0xff] %v452
    %469 = vst [vmem:[#allocation2 + $0x30] sm:$0xff] %v453
    %470 = vst [vmem:[#allocation2 + $0x38] sm:$0xff] %v454
    %471 = vst [vmem:[#allocation2 + $0x40] sm:$0xff] %v455
    %472 = vst [vmem:[#allocation2 + $0x48] sm:$0xff] %v456
    %473 = vst [vmem:[#allocation2 + $0x50] sm:$0xff] %v457
    %474 = vst [vmem:[#allocation2 + $0x58] sm:$0xff] %v458
    %475 = vst [vmem:[#allocation2 + $0x60] sm:$0xff] %v459
    %476 = vst [vmem:[#allocation2 + $0x68] sm:$0xff] %v460
    %477 = vst [vmem:[#allocation2 + $0x70] sm:$0xff] %v461
    %478 = vst [vmem:[#allocation2 + $0x78] sm:$0xff] %v462
    %v479 = vld [vmem:[#allocation3] sm:$0xff]
    %v480 = vld [vmem:[#allocation3 + $0x8] sm:$0xff]
    %v481 = vld [vmem:[#allocation3 + $0x10] sm:$0xff]
    %v482 = vld [vmem:[#allocation3 + $0x18] sm:$0xff]
    %v483 = vld [vmem:[#allocation3 + $0x20] sm:$0xff]
    %v484 = vld [vmem:[#allocation3 + $0x28] sm:$0xff]
    %v485 = vld [vmem:[#allocation3 + $0x30] sm:$0xff]
    %v486 = vld [vmem:[#allocation3 + $0x38] sm:$0xff]
    %v487 = vld [vmem:[#allocation3 + $0x40] sm:$0xff]
    %v488 = vld [vmem:[#allocation3 + $0x48] sm:$0xff]
    %v489 = vld [vmem:[#allocation3 + $0x50] sm:$0xff]
    %v490 = vld [vmem:[#allocation3 + $0x58] sm:$0xff]
    %v491 = vld [vmem:[#allocation3 + $0x60] sm:$0xff]
    %v492 = vld [vmem:[#allocation3 + $0x68] sm:$0xff]
    %v493 = vld [vmem:[#allocation3 + $0x70] sm:$0xff]
    %v494 = vld [vmem:[#allocation3 + $0x78] sm:$0xff]
    %495 = vadd.xlane.f32.xlu0 %v270
    %v496 = vpop.xlane.xlu0 %495
    %497 = vadd.xlane.f32.xlu0 %v271
    %v498 = vpop.xlane.xlu0 %497
    %499 = vadd.xlane.f32.xlu0 %v272
    %v500 = vpop.xlane.xlu0 %499
    %501 = vadd.xlane.f32.xlu0 %v273
    %v502 = vpop.xlane.xlu0 %501
    %503 = vadd.xlane.f32.xlu0 %v274
    %v504 = vpop.xlane.xlu0 %503
    %505 = vadd.xlane.f32.xlu0 %v275
    %v506 = vpop.xlane.xlu0 %505
    %507 = vadd.xlane.f32.xlu0 %v276
    %v508 = vpop.xlane.xlu0 %507
    %509 = vadd.xlane.f32.xlu0 %v277
    %v510 = vpop.xlane.xlu0 %509
    %511 = vadd.xlane.f32.xlu0 %v278
    %v512 = vpop.xlane.xlu0 %511
    %513 = vadd.xlane.f32.xlu0 %v279
    %v514 = vpop.xlane.xlu0 %513
    %515 = vadd.xlane.f32.xlu0 %v280
    %v516 = vpop.xlane.xlu0 %515
    %517 = vadd.xlane.f32.xlu0 %v281
    %v518 = vpop.xlane.xlu0 %517
    %519 = vadd.xlane.f32.xlu0 %v282
    %v520 = vpop.xlane.xlu0 %519
    %521 = vadd.xlane.f32.xlu0 %v283
    %v522 = vpop.xlane.xlu0 %521
    %523 = vadd.xlane.f32.xlu0 %v284
    %v524 = vpop.xlane.xlu0 %523
    %525 = vadd.xlane.f32.xlu0 %v285
    %v526 = vpop.xlane.xlu0 %525
    %v527 = vadd.f32 %v479, %v496
    %v528 = vadd.f32 %v480, %v498
    %v529 = vadd.f32 %v481, %v500
    %v530 = vadd.f32 %v482, %v502
    %v531 = vadd.f32 %v483, %v504
    %v532 = vadd.f32 %v484, %v506
    %v533 = vadd.f32 %v485, %v508
    %v534 = vadd.f32 %v486, %v510
    %v535 = vadd.f32 %v487, %v512
    %v536 = vadd.f32 %v488, %v514
    %v537 = vadd.f32 %v489, %v516
    %v538 = vadd.f32 %v490, %v518
    %v539 = vadd.f32 %v491, %v520
    %v540 = vadd.f32 %v492, %v522
    %v541 = vadd.f32 %v493, %v524
    %v542 = vadd.f32 %v494, %v526
    %vm543 = vcmask 7168
    %544 = vst.msk [vmem:[#allocation3] sm:$0xff] %vm543, %v527
    %545 = vst.msk [vmem:[#allocation3 + $0x8] sm:$0xff] %vm543, %v528
    %546 = vst.msk [vmem:[#allocation3 + $0x10] sm:$0xff] %vm543, %v529
    %547 = vst.msk [vmem:[#allocation3 + $0x18] sm:$0xff] %vm543, %v530
    %548 = vst.msk [vmem:[#allocation3 + $0x20] sm:$0xff] %vm543, %v531
    %549 = vst.msk [vmem:[#allocation3 + $0x28] sm:$0xff] %vm543, %v532
    %550 = vst.msk [vmem:[#allocation3 + $0x30] sm:$0xff] %vm543, %v533
    %551 = vst.msk [vmem:[#allocation3 + $0x38] sm:$0xff] %vm543, %v534
    %552 = vst.msk [vmem:[#allocation3 + $0x40] sm:$0xff] %vm543, %v535
    %553 = vst.msk [vmem:[#allocation3 + $0x48] sm:$0xff] %vm543, %v536
    %554 = vst.msk [vmem:[#allocation3 + $0x50] sm:$0xff] %vm543, %v537
    %555 = vst.msk [vmem:[#allocation3 + $0x58] sm:$0xff] %vm543, %v538
    %556 = vst.msk [vmem:[#allocation3 + $0x60] sm:$0xff] %vm543, %v539
    %557 = vst.msk [vmem:[#allocation3 + $0x68] sm:$0xff] %vm543, %v540
    %558 = vst.msk [vmem:[#allocation3 + $0x70] sm:$0xff] %vm543, %v541
    %559 = vst.msk [vmem:[#allocation3 + $0x78] sm:$0xff] %vm543, %v542
    // Predicated region
    $region26: #{tpu_custom_call.1} parent=1 // pred_check
      %p560 = pneg %p44
    $region27: #{tpu_custom_call.1} parent=1 // pred_check_branch
      %562 = sbr.rel (%p560) target = $region29
    $region28: #{tpu_custom_call.1} parent=1 // pred_region
      %v563 = vld [vmem:[#allocation2] sm:$0xff]
      %v564 = vld [vmem:[#allocation2 + $0x8] sm:$0xff]
      %v565 = vld [vmem:[#allocation2 + $0x10] sm:$0xff]
      %v566 = vld [vmem:[#allocation2 + $0x18] sm:$0xff]
      %v567 = vld [vmem:[#allocation2 + $0x20] sm:$0xff]
      %v568 = vld [vmem:[#allocation2 + $0x28] sm:$0xff]
      %v569 = vld [vmem:[#allocation2 + $0x30] sm:$0xff]
      %v570 = vld [vmem:[#allocation2 + $0x38] sm:$0xff]
      %v571 = vld [vmem:[#allocation2 + $0x40] sm:$0xff]
      %v572 = vld [vmem:[#allocation2 + $0x48] sm:$0xff]
      %v573 = vld [vmem:[#allocation2 + $0x50] sm:$0xff]
      %v574 = vld [vmem:[#allocation2 + $0x58] sm:$0xff]
      %v575 = vld [vmem:[#allocation2 + $0x60] sm:$0xff]
      %v576 = vld [vmem:[#allocation2 + $0x68] sm:$0xff]
      %v577 = vld [vmem:[#allocation2 + $0x70] sm:$0xff]
      %v578 = vld [vmem:[#allocation2 + $0x78] sm:$0xff]
      %v579 = vld [vmem:[#allocation3] sm:$0xff]
      %v580 = vld [vmem:[#allocation3 + $0x8] sm:$0xff]
      %v581 = vld [vmem:[#allocation3 + $0x10] sm:$0xff]
      %v582 = vld [vmem:[#allocation3 + $0x18] sm:$0xff]
      %v583 = vld [vmem:[#allocation3 + $0x20] sm:$0xff]
      %v584 = vld [vmem:[#allocation3 + $0x28] sm:$0xff]
      %v585 = vld [vmem:[#allocation3 + $0x30] sm:$0xff]
      %v586 = vld [vmem:[#allocation3 + $0x38] sm:$0xff]
      %v587 = vld [vmem:[#allocation3 + $0x40] sm:$0xff]
      %v588 = vld [vmem:[#allocation3 + $0x48] sm:$0xff]
      %v589 = vld [vmem:[#allocation3 + $0x50] sm:$0xff]
      %v590 = vld [vmem:[#allocation3 + $0x58] sm:$0xff]
      %v591 = vld [vmem:[#allocation3 + $0x60] sm:$0xff]
      %v592 = vld [vmem:[#allocation3 + $0x68] sm:$0xff]
      %v593 = vld [vmem:[#allocation3 + $0x70] sm:$0xff]
      %v594 = vld [vmem:[#allocation3 + $0x78] sm:$0xff]
      %v595 = vmax.f32 %v579, 1.0
      %v596 = vmax.f32 %v580, 1.0
      %v597 = vmax.f32 %v581, 1.0
      %v598 = vmax.f32 %v582, 1.0
      %v599 = vmax.f32 %v583, 1.0
      %v600 = vmax.f32 %v584, 1.0
      %v601 = vmax.f32 %v585, 1.0
      %v602 = vmax.f32 %v586, 1.0
      %v603 = vmax.f32 %v587, 1.0
      %v604 = vmax.f32 %v588, 1.0
      %v605 = vmax.f32 %v589, 1.0
      %v606 = vmax.f32 %v590, 1.0
      %v607 = vmax.f32 %v591, 1.0
      %v608 = vmax.f32 %v592, 1.0
      %v609 = vmax.f32 %v593, 1.0
      %v610 = vmax.f32 %v594, 1.0
      %612 = vset.pattern.permute.xlu0 0
      %613 = vperm.xlu0 %612, %v595
      %v614 = vpop.permute.xlu0 %613
      %617 = vset.pattern.permute.xlu0 0
      %618 = vperm.xlu0 %617, %v596
      %v619 = vpop.permute.xlu0 %618
      %622 = vset.pattern.permute.xlu0 0
      %623 = vperm.xlu0 %622, %v597
      %v624 = vpop.permute.xlu0 %623
      %627 = vset.pattern.permute.xlu0 0
      %628 = vperm.xlu0 %627, %v598
      %v629 = vpop.permute.xlu0 %628
      %632 = vset.pattern.permute.xlu0 0
      %633 = vperm.xlu0 %632, %v599
      %v634 = vpop.permute.xlu0 %633
      %637 = vset.pattern.permute.xlu0 0
      %638 = vperm.xlu0 %637, %v600
      %v639 = vpop.permute.xlu0 %638
      %642 = vset.pattern.permute.xlu0 0
      %643 = vperm.xlu0 %642, %v601
      %v644 = vpop.permute.xlu0 %643
      %647 = vset.pattern.permute.xlu0 0
      %648 = vperm.xlu0 %647, %v602
      %v649 = vpop.permute.xlu0 %648
      %652 = vset.pattern.permute.xlu0 0
      %653 = vperm.xlu0 %652, %v603
      %v654 = vpop.permute.xlu0 %653
      %657 = vset.pattern.permute.xlu0 0
      %658 = vperm.xlu0 %657, %v604
      %v659 = vpop.permute.xlu0 %658
      %662 = vset.pattern.permute.xlu0 0
      %663 = vperm.xlu0 %662, %v605
      %v664 = vpop.permute.xlu0 %663
      %667 = vset.pattern.permute.xlu0 0
      %668 = vperm.xlu0 %667, %v606
      %v669 = vpop.permute.xlu0 %668
      %672 = vset.pattern.permute.xlu0 0
      %673 = vperm.xlu0 %672, %v607
      %v674 = vpop.permute.xlu0 %673
      %677 = vset.pattern.permute.xlu0 0
      %678 = vperm.xlu0 %677, %v608
      %v679 = vpop.permute.xlu0 %678
      %682 = vset.pattern.permute.xlu0 0
      %683 = vperm.xlu0 %682, %v609
      %v684 = vpop.permute.xlu0 %683
      %687 = vset.pattern.permute.xlu0 0
      %688 = vperm.xlu0 %687, %v610
      %v689 = vpop.permute.xlu0 %688
      %v691 = vrcp.pop %v614
      %v692 = vmul.f32 %v563, %v691
      %v693 = vrcp.pop %v619
      %v694 = vmul.f32 %v564, %v693
      %v695 = vrcp.pop %v624
      %v696 = vmul.f32 %v565, %v695
      %v697 = vrcp.pop %v629
      %v698 = vmul.f32 %v566, %v697
      %v699 = vrcp.pop %v634
      %v700 = vmul.f32 %v567, %v699
      %v701 = vrcp.pop %v639
      %v702 = vmul.f32 %v568, %v701
      %v703 = vrcp.pop %v644
      %v704 = vmul.f32 %v569, %v703
      %v705 = vrcp.pop %v649
      %v706 = vmul.f32 %v570, %v705
      %v707 = vrcp.pop %v654
      %v708 = vmul.f32 %v571, %v707
      %v709 = vrcp.pop %v659
      %v710 = vmul.f32 %v572, %v709
      %v711 = vrcp.pop %v664
      %v712 = vmul.f32 %v573, %v711
      %v713 = vrcp.pop %v669
      %v714 = vmul.f32 %v574, %v713
      %v715 = vrcp.pop %v674
      %v716 = vmul.f32 %v575, %v715
      %v717 = vrcp.pop %v679
      %v718 = vmul.f32 %v576, %v717
      %v719 = vrcp.pop %v684
      %v720 = vmul.f32 %v577, %v719
      %v721 = vrcp.pop %v689
      %v722 = vmul.f32 %v578, %v721
      %723 = vst [vmem:[#allocation9] sm:$0xff] %v692
      %724 = vst [vmem:[#allocation9 + $0x8] sm:$0xff] %v694
      %725 = vst [vmem:[#allocation9 + $0x10] sm:$0xff] %v696
      %726 = vst [vmem:[#allocation9 + $0x18] sm:$0xff] %v698
      %727 = vst [vmem:[#allocation9 + $0x20] sm:$0xff] %v700
      %728 = vst [vmem:[#allocation9 + $0x28] sm:$0xff] %v702
      %729 = vst [vmem:[#allocation9 + $0x30] sm:$0xff] %v704
      %730 = vst [vmem:[#allocation9 + $0x38] sm:$0xff] %v706
      %731 = vst [vmem:[#allocation9 + $0x40] sm:$0xff] %v708
      %732 = vst [vmem:[#allocation9 + $0x48] sm:$0xff] %v710
      %733 = vst [vmem:[#allocation9 + $0x50] sm:$0xff] %v712
      %734 = vst [vmem:[#allocation9 + $0x58] sm:$0xff] %v714
      %735 = vst [vmem:[#allocation9 + $0x60] sm:$0xff] %v716
      %736 = vst [vmem:[#allocation9 + $0x68] sm:$0xff] %v718
      %737 = vst [vmem:[#allocation9 + $0x70] sm:$0xff] %v720
      %738 = vst [vmem:[#allocation9 + $0x78] sm:$0xff] %v722
      %v739 = vmul.f32 %v692, %v692
      %v740 = vmul.f32 %v694, %v694
      %v741 = vmul.f32 %v696, %v696
      %v742 = vmul.f32 %v698, %v698
      %v743 = vmul.f32 %v700, %v700
      %v744 = vmul.f32 %v702, %v702
      %v745 = vmul.f32 %v704, %v704
      %v746 = vmul.f32 %v706, %v706
      %v747 = vmul.f32 %v708, %v708
      %v748 = vmul.f32 %v710, %v710
      %v749 = vmul.f32 %v712, %v712
      %v750 = vmul.f32 %v714, %v714
      %v751 = vmul.f32 %v716, %v716
      %v752 = vmul.f32 %v718, %v718
      %v753 = vmul.f32 %v720, %v720
      %v754 = vmul.f32 %v722, %v722
      %755 = vmatprep.subr.mxu0 0.0
      %756 = vmatpush1.xpose.msra.mxu0 %v739
      %757 = vmatprep.subr.mxu0 0.0
      %758 = vmatpush1.xpose.msra.mxu0 %v740
      %759 = vmatprep.subr.mxu0 0.0
      %760 = vmatpush1.xpose.msra.mxu0 %v741
      %761 = vmatprep.subr.mxu0 0.0
      %762 = vmatpush1.xpose.msra.mxu0 %v742
      %763 = vmatprep.subr.mxu0 0.0
      %764 = vmatpush1.xpose.msra.mxu0 %v743
      %765 = vmatprep.subr.mxu0 0.0
      %766 = vmatpush1.xpose.msra.mxu0 %v744
      %767 = vmatprep.subr.mxu0 0.0
      %768 = vmatpush1.xpose.msra.mxu0 %v745
      %769 = vmatprep.subr.mxu0 0.0
      %770 = vmatpush1.xpose.msra.mxu0 %v746
      %771 = vmatprep.subr.mxu0 0.0
      %772 = vmatpush1.xpose.msra.mxu0 %v747
      %773 = vmatprep.subr.mxu0 0.0
      %774 = vmatpush1.xpose.msra.mxu0 %v748
      %775 = vmatprep.subr.mxu0 0.0
      %776 = vmatpush1.xpose.msra.mxu0 %v749
      %777 = vmatprep.subr.mxu0 0.0
      %778 = vmatpush1.xpose.msra.mxu0 %v750
      %779 = vmatprep.subr.mxu0 0.0
      %780 = vmatpush1.xpose.msra.mxu0 %v751
      %781 = vmatprep.subr.mxu0 0.0
      %782 = vmatpush1.xpose.msra.mxu0 %v752
      %783 = vmatprep.subr.mxu0 0.0
      %784 = vmatpush1.xpose.msra.mxu0 %v753
      %785 = vmatprep.subr.mxu0 0.0
      %786 = vmatpush1.xpose.msra.mxu0 %v754
      %787 = vmatprep.subr.mxu0 0.0
      %788 = vmatpush1.xpose.msra.mxu0 0.0
      %789 = vmatprep.subr.mxu0 0.0
      %790 = vmatpush1.xpose.msra.mxu0 0.0
      %791 = vmatprep.subr.mxu0 0.0
      %792 = vmatpush1.xpose.msra.mxu0 0.0
      %793 = vmatprep.subr.mxu0 0.0
      %794 = vmatpush1.xpose.msra.mxu0 0.0
      %795 = vmatprep.subr.mxu0 0.0
      %796 = vmatpush1.xpose.msra.mxu0 0.0
      %797 = vmatprep.subr.mxu0 0.0
      %798 = vmatpush1.xpose.msra.mxu0 0.0
      %799 = vmatprep.subr.mxu0 0.0
      %800 = vmatpush1.xpose.msra.mxu0 0.0
      %801 = vmatprep.subr.mxu0 0.0
      %802 = vmatpush1.xpose.msra.mxu0 0.0
      %803 = vmatprep.subr.mxu0 0.0
      %804 = vmatpush1.xpose.msra.mxu0 0.0
      %805 = vmatprep.subr.mxu0 0.0
      %806 = vmatpush1.xpose.msra.mxu0 0.0
      %807 = vmatprep.subr.mxu0 0.0
      %808 = vmatpush1.xpose.msra.mxu0 0.0
      %809 = vmatprep.subr.mxu0 0.0
      %810 = vmatpush1.xpose.msra.mxu0 0.0
      %811 = vmatprep.subr.mxu0 0.0
      %812 = vmatpush1.xpose.msra.mxu0 0.0
      %813 = vmatprep.subr.mxu0 0.0
      %814 = vmatpush1.xpose.msra.mxu0 0.0
      %815 = vmatprep.subr.mxu0 0.0
      %816 = vmatpush1.xpose.msra.mxu0 0.0
      %817 = vmatprep.subr.mxu0 0.0
      %818 = vmatpush1.xpose.msra.mxu0 0.0
      %819 = vmatprep.mubr.f32.mxu0 0.0
      %820 = vmatmul.mubr.f32.gmra.mrb[0].mxu0 1.0
      %v821 = vpop.f32.mrb[0].mxu0
      %v822 = vadd.f32 0.0, %v821
      %v823 = vpop.f32.mrb[0].mxu0
      %824 = vdwg.mxu0
      %825 = vst [vmem:[#allocation10] sm:$0x1] %v822
    $region29: #{tpu_custom_call.1} parent=1 // pred_fallthru
      _
    // Predicated region
    $region30: #{tpu_custom_call.1} parent=1 // pred_check
      _
    $region31: #{tpu_custom_call.1} parent=1 // pred_check_branch
      %827 = sbr.rel (0) target = $region33
    $region32: #{tpu_custom_call.1} parent=1 // pred_region
      %s829 = ssub.s32 2048, 2048
      %830 = vsyncadd [#allocation6], %s829
      %s831 = sshll.u32 [#allocation9], 4
      %s832 = int_to_ptr.vmem [resolvable:$true] %s831
      %837 = dma.vmem_to_hbm [thread:$0]  %s832, 2048, %s3, [#allocation6], 128, 128, 8
    $region33: #{tpu_custom_call.1} parent=1 // pred_fallthru
      _
    // Predicated region
    $region34: #{tpu_custom_call.1} parent=1 // pred_check
      _
    $region35: #{tpu_custom_call.1} parent=1 // pred_check_branch
      %839 = sbr.rel (0) target = $region37
    $region36: #{tpu_custom_call.1} parent=1 // pred_region
      %s841 = ssub.s32 16, 16
      %842 = vsyncadd [#allocation11], %s841
      %s844 = sshll.u32 [#allocation10], 4
      %s845 = int_to_ptr.vmem [resolvable:$true] %s844
      %847 = dma.vmem_to_hbm [thread:$0]  %s845, 16, %s4, [#allocation11]
    $region37: #{tpu_custom_call.1} parent=1 // pred_fallthru
      _
    // Predicated region
    $region38: #{tpu_custom_call.1} parent=1 // pred_check
      _
    $region39: #{tpu_custom_call.1} parent=1 // pred_check_branch
      %849 = sbr.rel (0) target = $region41
    $region40: #{tpu_custom_call.1} parent=1 // pred_region
      %850 = dma.done [#allocation6], 2048
    $region41: #{tpu_custom_call.1} parent=1 // pred_fallthru
      _
    // Predicated region
    $region42: #{tpu_custom_call.1} parent=1 // pred_check
      _
    $region43: #{tpu_custom_call.1} parent=1 // pred_check_branch
      %852 = sbr.rel (0) target = $region45
    $region44: #{tpu_custom_call.1} parent=1 // pred_region
      %853 = dma.done [#allocation11], 16
    $region45: #{tpu_custom_call.1} parent=1 // pred_fallthru
      _
    %854 = vsyncpa [#allocation5], 1
    %855 = vsyncpa [#allocation8], 1
    %856 = vsyncpa [#allocation6], 1
    %857 = vsyncpa [#allocation11], 1

</llo_original>
